<compile_context>
chip_gen: v7x
topology: tpu7x:2x2x1
jax: 0.10.0
libtpu: 0.0.40
codegen_flags: <defaults>
</compile_context>

<pallas_src>
import functools

import jax
import jax.numpy as jnp
from jax import lax
from jax.experimental import pallas as pl
from jax.experimental.pallas import tpu as pltpu


def _round_up(x, m):
    return (x + m - 1) // m * m


def _conv_block_kernel(xT_ref, w_ref, g_ref, b_ref, o_ref, y_ref, *, eps, true_p):
    # xT_ref : (D_pad, P_pad)   channel-major patches for image n (bf16/f32),
    #                           padded rows/cols are all-zero.
    # w_ref  : (CT, D_pad)      flattened conv weight tile (zero-padded).
    # g_ref  : (CT, 1)          InstanceNorm gamma (f32, zero-padded).
    # b_ref  : (CT, 1)          InstanceNorm beta  (f32, zero-padded).
    # o_ref  : (CT, P_pad)      output tile, NCHW-flat, lane-dense.
    # y_ref  : (CT, P_pad) f32  VMEM scratch staging the conv result.

    # Conv as one MXU matmul with f32 accumulation, staged through VMEM scratch.
    y_ref[...] = jnp.dot(w_ref[...], xT_ref[...],
                         preferred_element_type=jnp.float32)
    y = y_ref[...]

    p_pad = y.shape[-1]
    inv_p = jnp.float32(1.0 / true_p)

    # Two-pass InstanceNorm statistics.  Zero-padded spatial columns contribute
    # nothing to the mean sum; they are masked out of the centered variance.
    mean = jnp.sum(y, axis=-1, keepdims=True) * inv_p            # (CT, 1)
    centered = y - mean
    if true_p != p_pad:
        valid = lax.broadcasted_iota(jnp.int32, y.shape, 1) < true_p
        centered = jnp.where(valid, centered, 0.0)
    var = jnp.sum(centered * centered, axis=-1, keepdims=True) * inv_p

    # Fused affine:  y_hat = y * scale + shift   (rsqrt -> EUP slot).
    scale = g_ref[...] * lax.rsqrt(var + eps)
    shift = b_ref[...] - mean * scale
    yh = y * scale + shift

    # LeakyReLU(0.2)
    o_ref[...] = jnp.where(yh >= 0.0, yh, 0.2 * yh).astype(o_ref.dtype)


def _im2col_channel_major(xp, K, stride):
    """xp: (N, C, Hp, Wp) padded input -> channel-major patches (N, C*K*K, OH*OW).

    Row order is (c, kh, kw), matching w.reshape(Cout, Cin*K*K); no transpose is
    needed on either the input or the output side of the kernel.
    """
    N, C, Hp, Wp = xp.shape
    OH = (Hp - K) // stride + 1
    OW = (Wp - K) // stride + 1
    cols = []
    for i in range(K):
        for j in range(K):
            cols.append(xp[:, :, i:i + stride * OH:stride,
                               j:j + stride * OW:stride])        # (N, C, OH, OW)
    pat = jnp.stack(cols, axis=2)                                 # (N, C, K*K, OH, OW)
    return pat.reshape(N, C * K * K, OH * OW), OH, OW


def conv_block_forward(x, w, b, gamma, beta, *, stride, eps=1e-5,
                       use_bf16=True, out_dtype=None):
    """x: (N, Cin, H, W) NCHW.  w: (Cout, Cin, 4, 4).  Returns (N, Cout, OH, OW)."""
    del b  # conv bias is a per-channel constant -> removed exactly by InstanceNorm
    N, Cin, H, W = x.shape
    Cout = w.shape[0]
    K = 4
    in_dtype = jnp.bfloat16 if use_bf16 else jnp.float32
    if out_dtype is None:
        out_dtype = in_dtype

    # Reflect padding = 1 (cheap wrapper-side glue, ~1x input HBM traffic).
    xp = jnp.pad(x, ((0, 0), (0, 0), (1, 1), (1, 1)), mode="reflect")
    patches, OH, OW = _im2col_channel_major(xp, K, stride)       # (N, D, P)
    P = OH * OW
    D = Cin * K * K

    # Padded extents: lane-dense spatial dim, 128-multiple contraction dim,
    # sublane-aligned channel dim (only the real channel rows go to HBM).
    P_pad = _round_up(P, 128)
    D_pad = _round_up(D, 128)
    C_sub = _round_up(Cout, 8)
    C_TILE = 256 if C_sub >= 256 else C_sub      # 256-wide tiles feed v6e/v7x MXUs
    C_tot = _round_up(C_sub, C_TILE)
    n_ct = C_tot // C_TILE

    patches = jnp.pad(patches,
                      ((0, 0), (0, D_pad - D), (0, P_pad - P))).astype(in_dtype)
    w_flat = jnp.pad(w.reshape(Cout, D),
                     ((0, C_tot - Cout), (0, D_pad - D))).astype(in_dtype)
    g2 = jnp.pad(gamma.astype(jnp.float32), (0, C_tot - Cout)).reshape(C_tot, 1)
    b2 = jnp.pad(beta.astype(jnp.float32), (0, C_tot - Cout)).reshape(C_tot, 1)

    kernel = functools.partial(_conv_block_kernel, eps=eps, true_p=P)

    in_bytes = jnp.dtype(in_dtype).itemsize
    out_bytes = jnp.dtype(out_dtype).itemsize
    blk_bytes = (D_pad * P_pad * in_bytes            # patches block
                 + C_TILE * D_pad * in_bytes         # weight block
                 + 2 * C_TILE * 4                    # gamma / beta blocks
                 + C_TILE * P_pad * out_bytes)       # output block
    vmem_need = 2 * blk_bytes + C_TILE * P_pad * 4   # double-buffered + y scratch
    vmem_limit = int(min(48 * 2 ** 20, max(4 * vmem_need, 16 * 2 ** 20)))

    cost = pl.CostEstimate(
        flops=2 * N * Cout * D * P,
        transcendentals=N * Cout,
        bytes_accessed=int(patches.size * in_bytes + w_flat.size * in_bytes
                           + N * C_tot * P_pad * out_bytes),
    )

    out = pl.pallas_call(
        kernel,
        out_shape=jax.ShapeDtypeStruct((N, C_tot, P_pad), out_dtype),
        grid_spec=pltpu.PrefetchScalarGridSpec(
            num_scalar_prefetch=0,
            grid=(N, n_ct),
            in_specs=[
                pl.BlockSpec((pl.Squeezed(), D_pad, P_pad), lambda n, c: (n, 0, 0)),
                pl.BlockSpec((C_TILE, D_pad), lambda n, c: (c, 0)),
                pl.BlockSpec((C_TILE, 1), lambda n, c: (c, 0)),
                pl.BlockSpec((C_TILE, 1), lambda n, c: (c, 0)),
            ],
            out_specs=pl.BlockSpec((pl.Squeezed(), C_TILE, P_pad),
                                   lambda n, c: (n, c, 0)),
            scratch_shapes=[pltpu.VMEM((C_TILE, P_pad), jnp.float32)],
        ),
        compiler_params=pltpu.CompilerParams(
            dimension_semantics=("parallel", "parallel"),
            vmem_limit_bytes=vmem_limit,
        ),
        cost_estimate=cost,
    )(patches, w_flat, g2, b2)

    # Channel-major output is already NCHW-flat: slice padding + view-reshape,
    # no transpose pass.
    return out[:, :Cout, :P].reshape(N, Cout, OH, OW)


def conv_block_reference(x, w, b, gamma, beta, *, stride, eps=1e-5):
    """Pure-JAX reference matching the PyTorch module (includes the conv bias)."""
    xp = jnp.pad(x, ((0, 0), (0, 0), (1, 1), (1, 1)), mode="reflect")
    y = lax.conv_general_dilated(
        xp, w, window_strides=(stride, stride), padding="VALID",
        dimension_numbers=("NCHW", "OIHW", "NCHW"),
    ) + b.reshape(1, -1, 1, 1)
    mean = jnp.mean(y, axis=(2, 3), keepdims=True)
    var = jnp.mean((y - mean) ** 2, axis=(2, 3), keepdims=True)
    y = (y - mean) * lax.rsqrt(var + eps)
    y = y * gamma.reshape(1, -1, 1, 1) + beta.reshape(1, -1, 1, 1)
    return jnp.where(y >= 0.0, y, 0.2 * y)


if __name__ == "__main__":
    # Small shapes consistent with the module: batch=2, in_ch=4, out_ch=8,
    # spatial=16, stride=2  ->  output (2, 8, 8, 8)
    N, Cin, Cout, H, W, stride = 2, 4, 8, 16, 16, 2
    K = 4

    key = jax.random.PRNGKey(0)
    kx, kw, kb = jax.random.split(key, 3)
    x = jax.random.normal(kx, (N, Cin, H, W), dtype=jnp.float32)

    # Conv2d params (deterministic synthetic init, PyTorch-like scale).
    fan_in = Cin * K * K
    bound = 1.0 / (fan_in ** 0.5)
    w = jax.random.uniform(kw, (Cout, Cin, K, K), minval=-bound, maxval=bound,
                           dtype=jnp.float32)
    b = jax.random.uniform(kb, (Cout,), minval=-bound, maxval=bound,
                           dtype=jnp.float32)
    # InstanceNorm2d(affine=True) default init: weight=1, bias=0.
    gamma = jnp.ones((Cout,), dtype=jnp.float32)
    beta = jnp.zeros((Cout,), dtype=jnp.float32)

    ref = conv_block_reference(x, w, b, gamma, beta, stride=stride)

    # f32 path (f32 MXU inputs, f32 output).
    out_f32 = jax.block_until_ready(
        conv_block_forward(x, w, b, gamma, beta, stride=stride, use_bf16=False))
    assert out_f32.shape == (N, Cout, 8, 8), out_f32.shape
    assert jnp.allclose(out_f32, ref, atol=3e-2, rtol=3e-2), (
        float(jnp.max(jnp.abs(out_f32 - ref))))

    # Fast path (bf16 MXU inputs + bf16 output, f32 accumulation/statistics).
    out = jax.block_until_ready(
        conv_block_forward(x, w, b, gamma, beta, stride=stride, use_bf16=True))
    assert out.shape == (N, Cout, 8, 8), out.shape
    assert jnp.allclose(out.astype(jnp.float32), ref, atol=7e-2, rtol=7e-2), (
        float(jnp.max(jnp.abs(out.astype(jnp.float32) - ref))))

    print("KERNEL_OK")
</pallas_src>

<mosaic_0001>
module attributes {stable_mosaic.version = 11 : i64} {
  func.func @_conv_block_kernel(%arg0: i32, %arg1: i32, %arg2: memref<1x128x128xf32, #tpu.memory_space<vmem>>, %arg3: memref<8x128xf32, #tpu.memory_space<vmem>>, %arg4: memref<8x1xf32, #tpu.memory_space<vmem>>, %arg5: memref<8x1xf32, #tpu.memory_space<vmem>>, %arg6: memref<1x8x128xf32, #tpu.memory_space<vmem>>, %arg7: memref<8x128xf32, #tpu.memory_space<vmem>>) attributes {dimension_semantics = [#tpu.dimension_semantics<parallel>, #tpu.dimension_semantics<parallel>], iteration_bounds = array<i64: 2, 1>, scalar_prefetch = 0 : i64, scratch_operands = 1 : i64, tpu.core_type = #tpu.core_type<tc>, window_params = [{transform_indices = @transform_0, window_bounds = array<i64: 1, 128, 128>}, {transform_indices = @transform_1, window_bounds = array<i64: 8, 128>}, {transform_indices = @transform_2, window_bounds = array<i64: 8, 1>}, {transform_indices = @transform_3, window_bounds = array<i64: 8, 1>}, {transform_indices = @transform_4, window_bounds = array<i64: 1, 8, 128>}]} {
    %c0 = arith.constant 0 : index
    %c0_0 = arith.constant 0 : index
    %0 = vector.load %arg3[%c0, %c0_0] : memref<8x128xf32, #tpu.memory_space<vmem>>, vector<8x128xf32>
    %c0_1 = arith.constant 0 : index
    %c0_2 = arith.constant 0 : index
    %c0_3 = arith.constant 0 : index
    %1 = vector.load %arg2[%c0_1, %c0_2, %c0_3] : memref<1x128x128xf32, #tpu.memory_space<vmem>>, vector<1x128x128xf32>
    %2 = vector.shape_cast %1 : vector<1x128x128xf32> to vector<128x128xf32>
    %cst = arith.constant dense<0.000000e+00> : vector<8x128xf32>
    %3 = tpu.matmul %0, %2, %cst {dimension_numbers = #tpu.dot_dimension_numbers<[1], [0], [0], [1], [0, 0, 1, 1], [], []>} : vector<8x128xf32>, vector<128x128xf32>, vector<8x128xf32> -> vector<8x128xf32>
    %c0_4 = arith.constant 0 : index
    %c0_5 = arith.constant 0 : index
    %4 = vector.load %arg7[%c0_4, %c0_5] : memref<8x128xf32, #tpu.memory_space<vmem>>, vector<8x128xf32>
    tpu.vector_store %arg7[%c0_4, %c0_5], %3 {strides = array<i32>} : memref<8x128xf32, #tpu.memory_space<vmem>>, vector<8x128xf32>,
    %c0_6 = arith.constant 0 : index
    %c0_7 = arith.constant 0 : index
    %5 = vector.load %arg7[%c0_6, %c0_7] : memref<8x128xf32, #tpu.memory_space<vmem>>, vector<8x128xf32>
    %cst_8 = arith.constant dense<0.000000e+00> : vector<8xf32>
    %6 = vector.multi_reduction <add>, %5, %cst_8 [1] : vector<8x128xf32> to vector<8xf32>
    %7 = vector.shape_cast %6 : vector<8xf32> to vector<8x1xf32>
    %cst_9 = arith.constant 1.562500e-02 : f32
    %8 = vector.broadcast %cst_9 : f32 to vector<8x1xf32>
    %9 = arith.mulf %7, %8 : vector<8x1xf32>
    %10 = vector.broadcast %9 : vector<8x1xf32> to vector<8x128xf32>
    %11 = arith.subf %5, %10 : vector<8x128xf32>
    %12 = tpu.iota {dimensions = array<i32: 1>} : vector<8x128xi32>
    %c64_i32 = arith.constant 64 : i32
    %13 = vector.broadcast %c64_i32 : i32 to vector<8x128xi32>
    %14 = arith.cmpi slt, %12, %13 : vector<8x128xi32>
    %cst_10 = arith.constant 0.000000e+00 : f32
    %15 = vector.broadcast %cst_10 : f32 to vector<8x128xf32>
    %16 = arith.select %14, %11, %15 : vector<8x128xi1>, vector<8x128xf32>
    %17 = arith.mulf %16, %16 : vector<8x128xf32>
    %cst_11 = arith.constant dense<0.000000e+00> : vector<8xf32>
    %18 = vector.multi_reduction <add>, %17, %cst_11 [1] : vector<8x128xf32> to vector<8xf32>
    %19 = vector.shape_cast %18 : vector<8xf32> to vector<8x1xf32>
    %cst_12 = arith.constant 1.562500e-02 : f32
    %20 = vector.broadcast %cst_12 : f32 to vector<8x1xf32>
    %21 = arith.mulf %19, %20 : vector<8x1xf32>
    %c0_13 = arith.constant 0 : index
    %c0_14 = arith.constant 0 : index
    %22 = vector.load %arg4[%c0_13, %c0_14] : memref<8x1xf32, #tpu.memory_space<vmem>>, vector<8x1xf32>
    %cst_15 = arith.constant 9.99999974E-6 : f32
    %23 = vector.broadcast %cst_15 : f32 to vector<8x1xf32>
    %24 = arith.addf %21, %23 : vector<8x1xf32>
    %25 = math.rsqrt %24 : vector<8x1xf32>
    %26 = arith.mulf %22, %25 : vector<8x1xf32>
    %c0_16 = arith.constant 0 : index
    %c0_17 = arith.constant 0 : index
    %27 = vector.load %arg5[%c0_16, %c0_17] : memref<8x1xf32, #tpu.memory_space<vmem>>, vector<8x1xf32>
    %28 = arith.mulf %9, %26 : vector<8x1xf32>
    %29 = arith.subf %27, %28 : vector<8x1xf32>
    %30 = vector.broadcast %26 : vector<8x1xf32> to vector<8x128xf32>
    %31 = arith.mulf %5, %30 : vector<8x128xf32>
    %32 = vector.broadcast %29 : vector<8x1xf32> to vector<8x128xf32>
    %33 = arith.addf %31, %32 : vector<8x128xf32>
    %cst_18 = arith.constant 0.000000e+00 : f32
    %34 = vector.broadcast %cst_18 : f32 to vector<8x128xf32>
    %35 = arith.cmpf oge, %33, %34 : vector<8x128xf32>
    %cst_19 = arith.constant 2.000000e-01 : f32
    %36 = vector.broadcast %cst_19 : f32 to vector<8x128xf32>
    %37 = arith.mulf %36, %33 : vector<8x128xf32>
    %38 = arith.select %35, %33, %37 : vector<8x128xi1>, vector<8x128xf32>
    %c0_20 = arith.constant 0 : index
    %c0_21 = arith.constant 0 : index
    %c0_22 = arith.constant 0 : index
    %39 = vector.load %arg6[%c0_20, %c0_21, %c0_22] : memref<1x8x128xf32, #tpu.memory_space<vmem>>, vector<1x8x128xf32>
    %40 = vector.shape_cast %39 : vector<1x8x128xf32> to vector<8x128xf32>
    %41 = vector.shape_cast %38 : vector<8x128xf32> to vector<1x8x128xf32>
    tpu.vector_store %arg6[%c0_20, %c0_21, %c0_22], %41 {strides = array<i32>} : memref<1x8x128xf32, #tpu.memory_space<vmem>>, vector<1x8x128xf32>,
    return
  }
  func.func @transform_0(%arg0: i32, %arg1: i32) -> (i32, i32, i32) {
    %c0_i32 = arith.constant 0 : i32
    %c0_i32_0 = arith.constant 0 : i32
    %c0_i32_1 = arith.constant 0 : i32
    return %arg0, %c0_i32, %c0_i32_0 : i32, i32, i32
  }
  func.func @transform_1(%arg0: i32, %arg1: i32) -> (i32, i32) {
    %c0_i32 = arith.constant 0 : i32
    %c0_i32_0 = arith.constant 0 : i32
    return %arg1, %c0_i32 : i32, i32
  }
  func.func @transform_2(%arg0: i32, %arg1: i32) -> (i32, i32) {
    %c0_i32 = arith.constant 0 : i32
    %c0_i32_0 = arith.constant 0 : i32
    return %arg1, %c0_i32 : i32, i32
  }
  func.func @transform_3(%arg0: i32, %arg1: i32) -> (i32, i32) {
    %c0_i32 = arith.constant 0 : i32
    %c0_i32_0 = arith.constant 0 : i32
    return %arg1, %c0_i32 : i32, i32
  }
  func.func @transform_4(%arg0: i32, %arg1: i32) -> (i32, i32, i32) {
    %c0_i32 = arith.constant 0 : i32
    %c0_i32_0 = arith.constant 0 : i32
    return %arg0, %arg1, %c0_i32 : i32, i32, i32
  }
}

</mosaic_0001>

<llo_original>
// kernel: tpu_custom_call.1
$region0: #{tpu_custom_call.1}
  #allocation0 [shape = 'u32[]', space=smem, size = 0x4, offset = 0x4, fixed_abs, tag = 'smem constant byte address 0x4 - core index']
  #allocation1 [shape = 'u32[144,128]{1,0:T(1,128)}', space=vmem, size = 0x12000, scoped, tag = 'internal scratch']
  #allocation2 [shape = 'f32[8,128]{1,0:T(8,128)}', space=vmem, size = 0x1000, scoped, tag = 'scratch operand']
  %s0 = inlined_call_operand.hbm [shape: f32[2,128,128], index: 0, kind: input, shape index: {}]
  %s1 = inlined_call_operand.vmem [shape: f32[8,128], index: 1, kind: input, shape index: {}]
  %s2 = inlined_call_operand.vmem [shape: f32[8,1], index: 2, kind: input, shape index: {}]
  %s3 = inlined_call_operand.vmem [shape: f32[8,1], index: 3, kind: input, shape index: {}]
  %s4 = inlined_call_operand.hbm [shape: f32[2,8,128], index: 4, kind: output, shape index: {}]
  %s5 = sld [smem:[#allocation0]]
  $region53: #{tpu_custom_call.1} parent=0
    _
  %s7 = ssub.s32 1, %s5
  %s8 = scalar_select 0, %s7, %s5
  $region1: #{tpu_custom_call.1} parent=0
    #allocation3 [shape = 'u8[131072]{0}', space=vmem, size = 0x20000, scoped, tag = 'input window, operand 0']
    #allocation4 [shape = 's32[2]{0}', space=sflag, size = 0x8, scoped, tag = 'scoped memory for tpu_custom_call.1']
    #allocation5 [shape = 's32[2]{0}', space=sflag, size = 0x8, scoped, tag = 'scoped memory for tpu_custom_call.1']
    #allocation6 [shape = 'u8[8192]{0}', space=vmem, size = 0x2000, scoped, tag = 'output window, operand 0']
    %9 = vsyncpa [#allocation4], 0
    %s10 = scalar_lea.sflag [#allocation4], 1
    %11 = vsyncpa %s10, 0
    %12 = vsyncpa [#allocation5], 0
    %s13 = scalar_lea.sflag [#allocation5], 1
    %14 = vsyncpa %s13, 0
    loop: start=0, step=1, limit=4
    $region2: #{tpu_custom_call.1} parent=1 // loop_pre_header
      _
    $region3: #{tpu_custom_call.1} parent=1 // loop_header
      %s16 = sphi 0, %s20
      %p17 = scmp.ge.s32.totalorder %s16, 4
      %s23 = sphi 0, %s35
      %s24 = sphi 0, %s31
      %s25 = sphi 0, %s23
      %s26 = sphi 0, %s24
      %s27 = sphi 0, %s25
      %s28 = sphi 0, %s26
      %s38 = sphi 0, %s40
      %s41 = sphi 0, %s38
      %s42 = sphi 0, %s41
      %s58 = sphi 0, %s42
      %s64 = sphi 0, %s66
      %s67 = sphi 0, %s64
      %s68 = sphi 0, %s67
      %s84 = sphi 0, %s68
      %s90 = sphi 0, %s92
      %s93 = sphi 0, %s90
      %s94 = sphi 0, %s93
      %s110 = sphi 0, %s94
      %s116 = sphi 0, %s118
      %s119 = sphi 0, %s116
      %s120 = sphi 0, %s119
      %s136 = sphi 0, %s120
      %s144 = sphi 0, %s146
      %s147 = sphi 0, %s144
      %s148 = sphi 0, %s147
      %s164 = sphi 0, %s148
    $region4: #{tpu_custom_call.1} parent=1 // loop_header_branch
      %19 = sbr.rel (%p17) target = $region8
    $region5: #{tpu_custom_call.1} parent=1 // loop_body
      %s21 = ssub.s32 %s16, 1
      %s22 = ssub.s32 %s16, 2
      %s29 = sadd.s32 1, %s24
      %p30 = scmp.ge.s32.totalorder %s29, 1
      %s31 = scalar_select %p30, 0, %s29
      %s32 = sadd.s32 1, %s23
      %s33 = scalar_select %p30, %s32, %s23
      %p34 = scmp.ge.s32.totalorder %s33, 2
      %s35 = scalar_select %p34, 0, %s33
      %s36 = ssub.s32 %s23, %s35
      %p37 = scmp.eq.s32.totalorder %s36, 0
      %s39 = sadd.s32 %s38, 1
      %s40 = scalar_select %p37, %s38, %s39
      %p43 = pneg %p37
      %p44 = scmp.eq.s32.totalorder %s16, 1
      %p45 = por %p43, %p44
      %p46 = scmp.ne.s32.totalorder %s38, %s41
      %p47 = scmp.eq.s32.totalorder %s16, 0
      %p48 = por %p46, %p47
      %p49 = scmp.ne.s32.totalorder %s38, %s41
      %p50 = scmp.eq.s32.totalorder %s21, 1
      %p51 = por %p49, %p50
      %p52 = scmp.ne.s32.totalorder %s41, %s42
      %p53 = scmp.eq.s32.totalorder %s21, 0
      %p54 = por %p52, %p53
      %p55 = scmp.ne.s32.totalorder %s41, %s42
      %p56 = scmp.eq.s32.totalorder %s22, 1
      %p57 = por %p55, %p56
      %p59 = scmp.ne.s32.totalorder %s42, %s58
      %p60 = scmp.eq.s32.totalorder %s22, 0
      %p61 = por %p59, %p60
      %s62 = ssub.s32 %s24, %s31
      %p63 = scmp.eq.s32.totalorder %s62, 0
      %s65 = sadd.s32 %s64, 1
      %s66 = scalar_select %p63, %s64, %s65
      %p69 = pneg %p63
      %p70 = scmp.eq.s32.totalorder %s16, 1
      %p71 = por %p69, %p70
      %p72 = scmp.ne.s32.totalorder %s64, %s67
      %p73 = scmp.eq.s32.totalorder %s16, 0
      %p74 = por %p72, %p73
      %p75 = scmp.ne.s32.totalorder %s64, %s67
      %p76 = scmp.eq.s32.totalorder %s21, 1
      %p77 = por %p75, %p76
      %p78 = scmp.ne.s32.totalorder %s67, %s68
      %p79 = scmp.eq.s32.totalorder %s21, 0
      %p80 = por %p78, %p79
      %p81 = scmp.ne.s32.totalorder %s67, %s68
      %p82 = scmp.eq.s32.totalorder %s22, 1
      %p83 = por %p81, %p82
      %p85 = scmp.ne.s32.totalorder %s68, %s84
      %p86 = scmp.eq.s32.totalorder %s22, 0
      %p87 = por %p85, %p86
      %s88 = ssub.s32 %s24, %s31
      %p89 = scmp.eq.s32.totalorder %s88, 0
      %s91 = sadd.s32 %s90, 1
      %s92 = scalar_select %p89, %s90, %s91
      %p95 = pneg %p89
      %p96 = scmp.eq.s32.totalorder %s16, 1
      %p97 = por %p95, %p96
      %p98 = scmp.ne.s32.totalorder %s90, %s93
      %p99 = scmp.eq.s32.totalorder %s16, 0
      %p100 = por %p98, %p99
      %p101 = scmp.ne.s32.totalorder %s90, %s93
      %p102 = scmp.eq.s32.totalorder %s21, 1
      %p103 = por %p101, %p102
      %p104 = scmp.ne.s32.totalorder %s93, %s94
      %p105 = scmp.eq.s32.totalorder %s21, 0
      %p106 = por %p104, %p105
      %p107 = scmp.ne.s32.totalorder %s93, %s94
      %p108 = scmp.eq.s32.totalorder %s22, 1
      %p109 = por %p107, %p108
      %p111 = scmp.ne.s32.totalorder %s94, %s110
      %p112 = scmp.eq.s32.totalorder %s22, 0
      %p113 = por %p111, %p112
      %s114 = ssub.s32 %s24, %s31
      %p115 = scmp.eq.s32.totalorder %s114, 0
      %s117 = sadd.s32 %s116, 1
      %s118 = scalar_select %p115, %s116, %s117
      %p121 = pneg %p115
      %p122 = scmp.eq.s32.totalorder %s16, 1
      %p123 = por %p121, %p122
      %p124 = scmp.ne.s32.totalorder %s116, %s119
      %p125 = scmp.eq.s32.totalorder %s16, 0
      %p126 = por %p124, %p125
      %p127 = scmp.ne.s32.totalorder %s116, %s119
      %p128 = scmp.eq.s32.totalorder %s21, 1
      %p129 = por %p127, %p128
      %p130 = scmp.ne.s32.totalorder %s119, %s120
      %p131 = scmp.eq.s32.totalorder %s21, 0
      %p132 = por %p130, %p131
      %p133 = scmp.ne.s32.totalorder %s119, %s120
      %p134 = scmp.eq.s32.totalorder %s22, 1
      %p135 = por %p133, %p134
      %p137 = scmp.ne.s32.totalorder %s120, %s136
      %p138 = scmp.eq.s32.totalorder %s22, 0
      %p139 = por %p137, %p138
      %s140 = ssub.s32 %s23, %s35
      %s141 = ssub.s32 %s24, %s31
      %s142 = sor.u32 %s140, %s141
      %p143 = scmp.eq.s32.totalorder %s142, 0
      %s145 = sadd.s32 %s144, 1
      %s146 = scalar_select %p143, %s144, %s145
      %p149 = pneg %p143
      %p150 = scmp.eq.s32.totalorder %s16, 1
      %p151 = por %p149, %p150
      %p152 = scmp.ne.s32.totalorder %s144, %s147
      %p153 = scmp.eq.s32.totalorder %s16, 0
      %p154 = por %p152, %p153
      %p155 = scmp.ne.s32.totalorder %s144, %s147
      %p156 = scmp.eq.s32.totalorder %s21, 1
      %p157 = por %p155, %p156
      %p158 = scmp.ne.s32.totalorder %s147, %s148
      %p159 = scmp.eq.s32.totalorder %s21, 0
      %p160 = por %p158, %p159
      %p161 = scmp.ne.s32.totalorder %s147, %s148
      %p162 = scmp.eq.s32.totalorder %s22, 1
      %p163 = por %p161, %p162
      %p165 = scmp.ne.s32.totalorder %s148, %s164
      %p166 = scmp.eq.s32.totalorder %s22, 0
      %p167 = por %p165, %p166
      %p168 = scmp.le.s32.totalorder 1, %s16
      %p169 = scmp.lt.s32.totalorder %s16, 3
      %p170 = pnand %p168, %p169
      %p171 = pneg %p170
      // Predicated region
      $region9: #{tpu_custom_call.1} parent=5 // pred_check
        _
      $region10: #{tpu_custom_call.1} parent=5 // pred_check_branch
        %173 = sbr.rel (%p170) target = $region12
      $region11: #{tpu_custom_call.1} parent=5 // pred_region
        %s174 = ssub.s32 %s16, 1
        // Predicated region
        $region13: #{tpu_custom_call.1} parent=11 // pred_check
          %p175 = pneg %p80
        $region14: #{tpu_custom_call.1} parent=11 // pred_check_branch
          %177 = sbr.rel (%p175) target = $region16
        $region15: #{tpu_custom_call.1} parent=11 // pred_region
          %p178 = scmp.lt.s32.totalorder %s26, 0
          %s179 = scalar_select %p178, %s26, 0
          %s180 = smul.addr %s179, 8
          %s181 = scalar_lea.vmem %s1, %s180
        $region16: #{tpu_custom_call.1} parent=11 // pred_fallthru
          _
        // Predicated region
        $region17: #{tpu_custom_call.1} parent=11 // pred_check
          %p182 = pneg %p106
        $region18: #{tpu_custom_call.1} parent=11 // pred_check_branch
          %184 = sbr.rel (%p182) target = $region20
        $region19: #{tpu_custom_call.1} parent=11 // pred_region
          %p185 = scmp.lt.s32.totalorder %s26, 0
          %s186 = scalar_select %p185, %s26, 0
          %s187 = smul.addr %s186, 8
          %s188 = scalar_lea.vmem %s2, %s187
        $region20: #{tpu_custom_call.1} parent=11 // pred_fallthru
          _
        // Predicated region
        $region21: #{tpu_custom_call.1} parent=11 // pred_check
          %p189 = pneg %p132
        $region22: #{tpu_custom_call.1} parent=11 // pred_check_branch
          %191 = sbr.rel (%p189) target = $region24
        $region23: #{tpu_custom_call.1} parent=11 // pred_region
          %p192 = scmp.lt.s32.totalorder %s26, 0
          %s193 = scalar_select %p192, %s26, 0
          %s194 = smul.addr %s193, 8
          %s195 = scalar_lea.vmem %s3, %s194
        $region24: #{tpu_custom_call.1} parent=11 // pred_fallthru
          _
      $region12: #{tpu_custom_call.1} parent=5 // pred_fallthru
        _
      %p196 = scmp.lt.s32.totalorder %s16, 2
      // Predicated region
      $region25: #{tpu_custom_call.1} parent=5 // pred_check
        %p197 = pneg %p196
      $region26: #{tpu_custom_call.1} parent=5 // pred_check_branch
        %199 = sbr.rel (%p197) target = $region28
      $region27: #{tpu_custom_call.1} parent=5 // pred_region
        // Predicated region
        $region29: #{tpu_custom_call.1} parent=27 // pred_check
          %p200 = pneg %p48
        $region30: #{tpu_custom_call.1} parent=27 // pred_check_branch
          %202 = sbr.rel (%p200) target = $region32
        $region31: #{tpu_custom_call.1} parent=27 // pred_region
          %s203 = sand.u32 %s38, 1
          %s204 = scalar_lea.sflag [#allocation4], %s203
          %s205 = sand.u32 %s38, 1
          %s206 = smul.addr %s205, 128
          %s207 = scalar_lea.vmem [#allocation3], %s206
          %s209 = ssub.s32 2048, 2048
          %210 = vsyncadd %s204, %s209
          %s211 = smul.addr %s23, 16
          %s212 = smul.addr %s211, 128
          %s213 = scalar_lea.hbm %s0, %s212
          %s214 = sshll.u32 %s207, 4
          %s215 = int_to_ptr.vmem [resolvable:$true] %s214
          %220 = dma.hbm_to_vmem [thread:$0]  %s213, 2048, %s215, %s204, 128, 128, 8
        $region32: #{tpu_custom_call.1} parent=27 // pred_fallthru
          _
      $region28: #{tpu_custom_call.1} parent=5 // pred_fallthru
        _
      %p221 = scmp.le.s32.totalorder 1, %s16
      %p222 = scmp.lt.s32.totalorder %s16, 3
      %p223 = pnand %p221, %p222
      %p224 = pneg %p223
      // Predicated region
      $region33: #{tpu_custom_call.1} parent=5 // pred_check
        _
      $region34: #{tpu_custom_call.1} parent=5 // pred_check_branch
        %226 = sbr.rel (%p223) target = $region36
      $region35: #{tpu_custom_call.1} parent=5 // pred_region
        %s227 = ssub.s32 %s16, 1
        %s228 = sand.u32 %s41, 1
        %s229 = scalar_lea.sflag [#allocation4], %s228
        %s230 = sand.u32 %s41, 1
        %s231 = smul.addr %s230, 128
        %s232 = scalar_lea.vmem [#allocation3], %s231
        // Predicated region
        $region37: #{tpu_custom_call.1} parent=35 // pred_check
          %p233 = pneg %p54
        $region38: #{tpu_custom_call.1} parent=35 // pred_check_branch
          %235 = sbr.rel (%p233) target = $region40
        $region39: #{tpu_custom_call.1} parent=35 // pred_region
          %236 = dma.done %s229, 2048
        $region40: #{tpu_custom_call.1} parent=35 // pred_fallthru
          _
        %s237 = sand.u32 %s41, 1
        %s238 = scalar_lea.sflag [#allocation4], %s237
        %s239 = sand.u32 %s41, 1
        %s240 = smul.addr %s239, 128
        %s241 = scalar_lea.vmem [#allocation3], %s240
        %p242 = pneg %p54
        %p243 = pneg %p51
        %p244 = scmp.lt.s32.totalorder %s26, 0
        %s245 = scalar_select %p244, %s26, 0
        %s246 = smul.addr %s245, 8
        %s247 = scalar_lea.vmem %s1, %s246
        %p248 = pneg %p80
        %p249 = pneg %p77
        %p250 = scmp.lt.s32.totalorder %s26, 0
        %s251 = scalar_select %p250, %s26, 0
        %s252 = smul.addr %s251, 8
        %s253 = scalar_lea.vmem %s2, %s252
        %p254 = pneg %p106
        %p255 = pneg %p103
        %p256 = scmp.lt.s32.totalorder %s26, 0
        %s257 = scalar_select %p256, %s26, 0
        %s258 = smul.addr %s257, 8
        %s259 = scalar_lea.vmem %s3, %s258
        %p260 = pneg %p132
        %p261 = pneg %p129
        %p262 = pneg %p160
        %p263 = pneg %p157
        %s264 = sand.u32 %s147, 1
        %s265 = scalar_lea.sflag [#allocation5], %s264
        %s266 = sand.u32 %s147, 1
        %s267 = smul.addr %s266, 8
        %s268 = scalar_lea.vmem [#allocation6], %s267
        %p269 = scmp.lt.s32.totalorder %s26, 0
        %s270 = scalar_select %p269, %s26, 0
        %s271 = smul.addr %s270, 8
        %s272 = scalar_lea.vmem %s1, %s271
        %p273 = scmp.lt.s32.totalorder %s26, 0
        %s274 = scalar_select %p273, %s26, 0
        %s275 = smul.addr %s274, 8
        %s276 = scalar_lea.vmem %s2, %s275
        %p277 = scmp.lt.s32.totalorder %s26, 0
        %s278 = scalar_select %p277, %s26, 0
        %s279 = smul.addr %s278, 8
        %s280 = scalar_lea.vmem %s3, %s279
        %v281 = vld [vmem:[%s272] sm:$0xff]
        %v282 = vld [vmem:[%s232] sm:$0xff]
        %v283 = vld [vmem:[%s232 + $0x8] sm:$0xff]
        %v284 = vld [vmem:[%s232 + $0x10] sm:$0xff]
        %v285 = vld [vmem:[%s232 + $0x18] sm:$0xff]
        %v286 = vld [vmem:[%s232 + $0x20] sm:$0xff]
        %v287 = vld [vmem:[%s232 + $0x28] sm:$0xff]
        %v288 = vld [vmem:[%s232 + $0x30] sm:$0xff]
        %v289 = vld [vmem:[%s232 + $0x38] sm:$0xff]
        %v290 = vld [vmem:[%s232 + $0x40] sm:$0xff]
        %v291 = vld [vmem:[%s232 + $0x48] sm:$0xff]
        %v292 = vld [vmem:[%s232 + $0x50] sm:$0xff]
        %v293 = vld [vmem:[%s232 + $0x58] sm:$0xff]
        %v294 = vld [vmem:[%s232 + $0x60] sm:$0xff]
        %v295 = vld [vmem:[%s232 + $0x68] sm:$0xff]
        %v296 = vld [vmem:[%s232 + $0x70] sm:$0xff]
        %v297 = vld [vmem:[%s232 + $0x78] sm:$0xff]
        %298 = vmatprep.subr.mxu0 0.0
        %299 = vmatpush1.msra.mxu0 %v282
        %300 = vmatprep.subr.mxu0 0.0
        %301 = vmatpush1.msra.mxu0 %v283
        %302 = vmatprep.subr.mxu0 0.0
        %303 = vmatpush1.msra.mxu0 %v284
        %304 = vmatprep.subr.mxu0 0.0
        %305 = vmatpush1.msra.mxu0 %v285
        %306 = vmatprep.subr.mxu0 0.0
        %307 = vmatpush1.msra.mxu0 %v286
        %308 = vmatprep.subr.mxu0 0.0
        %309 = vmatpush1.msra.mxu0 %v287
        %310 = vmatprep.subr.mxu0 0.0
        %311 = vmatpush1.msra.mxu0 %v288
        %312 = vmatprep.subr.mxu0 0.0
        %313 = vmatpush1.msra.mxu0 %v289
        %314 = vmatprep.subr.mxu0 0.0
        %315 = vmatpush1.msra.mxu0 %v290
        %316 = vmatprep.subr.mxu0 0.0
        %317 = vmatpush1.msra.mxu0 %v291
        %318 = vmatprep.subr.mxu0 0.0
        %319 = vmatpush1.msra.mxu0 %v292
        %320 = vmatprep.subr.mxu0 0.0
        %321 = vmatpush1.msra.mxu0 %v293
        %322 = vmatprep.subr.mxu0 0.0
        %323 = vmatpush1.msra.mxu0 %v294
        %324 = vmatprep.subr.mxu0 0.0
        %325 = vmatpush1.msra.mxu0 %v295
        %326 = vmatprep.subr.mxu0 0.0
        %327 = vmatpush1.msra.mxu0 %v296
        %328 = vmatprep.subr.mxu0 0.0
        %329 = vmatpush1.msra.mxu0 %v297
        %330 = vmatprep.subr.mxu0 0.0
        %331 = vmatpush1.msra.mxu0 0.0
        %332 = vmatprep.subr.mxu0 0.0
        %333 = vmatpush1.msra.mxu0 0.0
        %334 = vmatprep.subr.mxu0 0.0
        %335 = vmatpush1.msra.mxu0 0.0
        %336 = vmatprep.subr.mxu0 0.0
        %337 = vmatpush1.msra.mxu0 0.0
        %338 = vmatprep.subr.mxu0 0.0
        %339 = vmatpush1.msra.mxu0 0.0
        %340 = vmatprep.subr.mxu0 0.0
        %341 = vmatpush1.msra.mxu0 0.0
        %342 = vmatprep.subr.mxu0 0.0
        %343 = vmatpush1.msra.mxu0 0.0
        %344 = vmatprep.subr.mxu0 0.0
        %345 = vmatpush1.msra.mxu0 0.0
        %346 = vmatprep.subr.mxu0 0.0
        %347 = vmatpush1.msra.mxu0 0.0
        %348 = vmatprep.subr.mxu0 0.0
        %349 = vmatpush1.msra.mxu0 0.0
        %350 = vmatprep.subr.mxu0 0.0
        %351 = vmatpush1.msra.mxu0 0.0
        %352 = vmatprep.subr.mxu0 0.0
        %353 = vmatpush1.msra.mxu0 0.0
        %354 = vmatprep.subr.mxu0 0.0
        %355 = vmatpush1.msra.mxu0 0.0
        %356 = vmatprep.subr.mxu0 0.0
        %357 = vmatpush1.msra.mxu0 0.0
        %358 = vmatprep.subr.mxu0 0.0
        %359 = vmatpush1.msra.mxu0 0.0
        %360 = vmatprep.subr.mxu0 0.0
        %361 = vmatpush1.msra.mxu0 0.0
        %362 = vmatprep.mubr.f32.mxu0 0.0
        %363 = vmatmul.mubr.f32.gmra.mrb[0].mxu0 %v281
        %v364 = vpop.f32.mrb[0].mxu0
        %v365 = vadd.f32 0.0, %v364
        %v366 = vpop.f32.mrb[0].mxu0
        %367 = vdwg.mxu0
        %368 = vst [vmem:[#allocation2] sm:$0xff] %v365
        %v369 = vld [vmem:[#allocation2] sm:$0xff]
        %370 = vadd.xlane.f32.xlu0 %v369
        %v371 = vpop.xlane.xlu0 %370
        %v372 = vmul.f32 %v371, 0.015625
        %v373 = vsub.f32 %v369, %v372
        %v374 = vlaneseq
        %v375 = vand.u32 %v374, 127
        %vm376 = vcmp.lt.s32.totalorder %v375, 64
        %v377 = vsel %vm376, %v373, 0.0
        %v378 = vmul.f32 %v377, %v377
        %379 = vadd.xlane.f32.xlu0 %v378
        %v380 = vpop.xlane.xlu0 %379
        %v381 = vmul.f32 %v380, 0.015625
        %v382 = vld [vmem:[%s276] sm:$0xff]
        %v383 = vadd.f32 %v381, 1e-05
        %v384 = vrsqrt.pop %v383
        %v385 = vmul.f32 %v382, %v384
        %v386 = vld [vmem:[%s280] sm:$0xff]
        %v387 = vmul.f32 %v372, %v385
        %v388 = vsub.f32 %v386, %v387
        %390 = vset.pattern.permute.xlu0 0
        %391 = vperm.xlu0 %390, %v385
        %v392 = vpop.permute.xlu0 %391
        %v394 = vmul.f32 %v369, %v392
        %396 = vset.pattern.permute.xlu0 0
        %397 = vperm.xlu0 %396, %v388
        %v398 = vpop.permute.xlu0 %397
        %v400 = vadd.f32 %v394, %v398
        %vm401 = vcmp.ge.f32.partialorder %v400, 0.0
        %v402 = vmul.f32 %v400, 0.2
        %v403 = vsel %vm401, %v400, %v402
        %404 = vst [vmem:[%s268] sm:$0xff] %v403
        %s405 = sand.u32 %s147, 1
        %s406 = scalar_lea.sflag [#allocation5], %s405
        %s407 = sand.u32 %s147, 1
        %s408 = smul.addr %s407, 8
        %s409 = scalar_lea.vmem [#allocation6], %s408
        // Predicated region
        $region41: #{tpu_custom_call.1} parent=35 // pred_check
          %p410 = pneg %p157
        $region42: #{tpu_custom_call.1} parent=35 // pred_check_branch
          %412 = sbr.rel (%p410) target = $region44
        $region43: #{tpu_custom_call.1} parent=35 // pred_region
          %s414 = ssub.s32 128, 128
          %415 = vsyncadd %s406, %s414
          %s416 = sadd.s32 %s26, %s25
          %s417 = smul.addr %s416, 128
          %s418 = scalar_lea.hbm %s4, %s417
          %s420 = sshll.u32 %s409, 4
          %s421 = int_to_ptr.vmem [resolvable:$true] %s420
          %423 = dma.vmem_to_hbm [thread:$0]  %s421, 128, %s418, %s406
        $region44: #{tpu_custom_call.1} parent=35 // pred_fallthru
          _
      $region36: #{tpu_custom_call.1} parent=5 // pred_fallthru
        _
      %p424 = scmp.le.s32.totalorder 2, %s16
      // Predicated region
      $region45: #{tpu_custom_call.1} parent=5 // pred_check
        %p425 = pneg %p424
      $region46: #{tpu_custom_call.1} parent=5 // pred_check_branch
        %427 = sbr.rel (%p425) target = $region48
      $region47: #{tpu_custom_call.1} parent=5 // pred_region
        %s428 = ssub.s32 %s16, 2
        // Predicated region
        $region49: #{tpu_custom_call.1} parent=47 // pred_check
          %p429 = pneg %p163
        $region50: #{tpu_custom_call.1} parent=47 // pred_check_branch
          %431 = sbr.rel (%p429) target = $region52
        $region51: #{tpu_custom_call.1} parent=47 // pred_region
          %s432 = sand.u32 %s148, 1
          %s433 = scalar_lea.sflag [#allocation5], %s432
          %s434 = sand.u32 %s148, 1
          %s435 = smul.addr %s434, 8
          %s436 = scalar_lea.vmem [#allocation6], %s435
          %437 = dma.done %s433, 128
        $region52: #{tpu_custom_call.1} parent=47 // pred_fallthru
          _
      $region48: #{tpu_custom_call.1} parent=5 // pred_fallthru
        _
    $region6: #{tpu_custom_call.1} parent=1 // loop_footer
      %s20 = sadd.s32 1, %s16
    $region7: #{tpu_custom_call.1} parent=1 // loop_footer_branch
      %15 = sbr.rel target = $region3
    $region8: #{tpu_custom_call.1} parent=1 // loop_exit
      _
    %438 = vsyncpa [#allocation4], 1
    %s439 = scalar_lea.sflag [#allocation4], 1
    %440 = vsyncpa %s439, 1
    %441 = vsyncpa [#allocation5], 1
    %s442 = scalar_lea.sflag [#allocation5], 1
    %443 = vsyncpa %s442, 1

</llo_original>
